<compile_context>
chip_gen: v7x
topology: tpu7x:2x2x1
jax: 0.10.0
libtpu: 0.0.40
codegen_flags: <defaults>
</compile_context>

<pallas_src>
import numpy as np
import jax
import jax.numpy as jnp
from jax.experimental import pallas as pl
from jax.experimental.pallas import tpu as pltpu

N_QUBITS = 4
N_LAYERS = 6
DIM = 2 ** N_QUBITS  # 16
HID = 8


# ----------------------------------------------------------------------------
# Host-side (one-time per weight set): build the fixed 16x16 entangling unitary
# and fold all x-independent linear algebra into two small real matrices.
# PennyLane convention: wire 0 is the most-significant bit of the basis index.
# ----------------------------------------------------------------------------
def _rz(a):
    return np.array([[np.exp(-0.5j * a), 0.0], [0.0, np.exp(0.5j * a)]],
                    dtype=np.complex128)


def _ry(a):
    c, s = np.cos(a / 2.0), np.sin(a / 2.0)
    return np.array([[c, -s], [s, c]], dtype=np.complex128)


def _rot(phi, theta, omega):
    # qml.Rot(phi, theta, omega) = RZ(omega) RY(theta) RZ(phi)
    return _rz(omega) @ _ry(theta) @ _rz(phi)


def _single_qubit_full(gate, wire, n=N_QUBITS):
    u = np.eye(1, dtype=np.complex128)
    for w in range(n):
        u = np.kron(u, gate if w == wire else np.eye(2, dtype=np.complex128))
    return u


def _cnot_full(control, target, n=N_QUBITS):
    dim = 2 ** n
    u = np.zeros((dim, dim), dtype=np.complex128)
    for b in range(dim):
        cbit = (b >> (n - 1 - control)) & 1
        bp = b ^ (1 << (n - 1 - target)) if cbit else b
        u[bp, b] = 1.0
    return u


def build_entangling_unitary(weights_np):
    # weights_np: (N_LAYERS, N_QUBITS, 3) -- StronglyEntanglingLayers
    u = np.eye(DIM, dtype=np.complex128)
    for l in range(N_LAYERS):
        for w in range(N_QUBITS):
            g = _rot(weights_np[l, w, 0], weights_np[l, w, 1], weights_np[l, w, 2])
            u = _single_qubit_full(g, w) @ u
        r = (l % (N_QUBITS - 1)) + 1  # default ranges
        for w in range(N_QUBITS):
            u = _cnot_full(w, (w + r) % N_QUBITS) @ u
    return u


def _basis_bits():
    # mask[b, i] = bit of wire i in basis state b (wire 0 = MSB)
    mask = np.zeros((DIM, N_QUBITS), dtype=np.float64)
    for b in range(DIM):
        for i in range(N_QUBITS):
            mask[b, i] = (b >> (N_QUBITS - 1 - i)) & 1
    pop = mask.sum(axis=1).astype(np.int64)
    return mask, pop


def prepare_params(q_weights, w1, b1, w2, b2):
    """One-time host preprocessing; call once per weight set and reuse.

    Returns jnp arrays consumed by the Pallas kernel:
      M2    (32, 16): RX-embedding phase + entangling unitary (complex folded into
                      a real block matrix) applied on the LEFT of column states.
      ZW1L2 (8, 32) : |amp|^2 re/im add + <Z_i> map + fc1 weight, all folded:
                      h = ZW1L2 @ [o_re^2; o_im^2] + b1.
      b1c (8,1), w2c (8,1), b2s (1,1): classical head, column layout.
    """
    qw = np.asarray(q_weights, dtype=np.float64)
    u = build_entangling_unitary(qw)
    ur, ui = u.real, u.imag
    # Column-state application: o = U psi;  [o_re; o_im] = M @ [psi_re; psi_im]
    M = np.block([[ur, -ui], [ui, ur]])                          # (32, 32)
    mask, pop = _basis_bits()
    # amplitude_b of RX-embedded |0..0> = mag_b * (-i)^popcount(b)
    re_tab = np.array([1.0, 0.0, -1.0, 0.0])
    im_tab = np.array([0.0, -1.0, 0.0, 1.0])
    P = np.concatenate([np.diag(re_tab[pop % 4]),
                        np.diag(im_tab[pop % 4])], axis=0)       # (32, 16)
    M2 = (M @ P).astype(np.float32)                              # (32, 16)
    # <Z_i> = probs @ zsign folds into fc1:  h = (w1^T zsign^T) @ probs + b1.
    # probs = o_re^2 + o_im^2, so duplicate along K to consume all 32 rows of o^2.
    zsign = 1.0 - 2.0 * mask                                     # (16, 4)
    ZW1L = np.asarray(w1, np.float64).T @ zsign.T                # (8, 16)
    ZW1L2 = np.concatenate([ZW1L, ZW1L], axis=1).astype(np.float32)  # (8, 32)
    b1c = np.asarray(b1, np.float32).reshape(HID, 1)
    w2c = np.asarray(w2, np.float32).reshape(HID, 1)
    b2s = np.asarray(b2, np.float32).reshape(1, 1)
    return (jnp.asarray(M2), jnp.asarray(ZW1L2), jnp.asarray(b1c),
            jnp.asarray(w2c), jnp.asarray(b2s))


# ----------------------------------------------------------------------------
# Pallas kernel: whole forward pass, feature-major / lane-dense in VMEM.
# ----------------------------------------------------------------------------
def hybrid_kernel(xT_ref, m2_ref, zw1_ref, b1_ref, w2_ref, b2_ref, out_ref):
    xT = xT_ref[...]                                    # (4, TB) feature-major
    c = jnp.cos(0.5 * xT)                               # (4, TB)
    s = jnp.sin(0.5 * xT)

    # |amplitude| rows via Kronecker factorization (wire 0 = MSB of basis index):
    #   p01 = kron([c0,s0],[c1,s1]) ; p23 = kron([c2,s2],[c3,s3]) ; mag = kron(p01,p23)
    p01 = jnp.concatenate([c[0:1] * c[1:2], c[0:1] * s[1:2],
                           s[0:1] * c[1:2], s[0:1] * s[1:2]], axis=0)   # (4, TB)
    p23 = jnp.concatenate([c[2:3] * c[3:4], c[2:3] * s[3:4],
                           s[2:3] * c[3:4], s[2:3] * s[3:4]], axis=0)   # (4, TB)
    mag = jnp.concatenate([p01[j:j + 1] * p23 for j in range(4)], axis=0)  # (16, TB)

    # Phase + 6-layer entangling unitary (complex, split re/im) in ONE matmul.
    o = jnp.dot(m2_ref[...], mag, preferred_element_type=jnp.float32)   # (32, TB)
    o2 = o * o                                                           # (32, TB)

    # |amp|^2 re/im add + <Z_i> map + fc1 all folded into one K=32 matmul; ReLU.
    h = jnp.dot(zw1_ref[...], o2,
                preferred_element_type=jnp.float32) + b1_ref[...]        # (8, TB)
    h = jnp.maximum(h, 0.0)

    # out = sigmoid(w2 . h + b2): sublane reduce (XLU) + single EUP tanh.
    logit = jnp.sum(h * w2_ref[...], axis=0, keepdims=True) + b2_ref[...]  # (1, TB)
    out_ref[...] = 0.5 * (1.0 + jnp.tanh(0.5 * logit))


def _round_up(n, m):
    return ((n + m - 1) // m) * m


def hybrid_forward(x, prepared, *, tb=None):
    """x: (B, 4) -> (B, 1) sigmoid probabilities. `prepared` = prepare_params(...)."""
    m2, zw1_2, b1c, w2c, b2s = prepared
    x = jnp.asarray(x, dtype=jnp.float32)
    B = x.shape[0]
    if tb is None:
        bp0 = _round_up(B, 128)
        # tb <= 1024: big enough to amortize the ~0.35us per-step overhead, small
        # enough that mid/large batches get a multi-step grid (pipelined DMA and
        # TensorCore sharding on v7x).  VMEM per step is a few MiB at most.
        tb = bp0 if bp0 <= 1024 else 1024
    bp = _round_up(B, tb)
    # Feature-major, lane-dense layout: batch on the 128-lane axis (zero-padded;
    # padded lanes give cos(0)=1 -> finite values that are sliced off below).
    xT = jnp.pad(jnp.transpose(x), ((0, 0), (0, bp - B)))

    def full_spec(shape):
        return pl.BlockSpec(shape, lambda i: (0, 0))

    out = pl.pallas_call(
        hybrid_kernel,
        out_shape=jax.ShapeDtypeStruct((1, bp), jnp.float32),
        grid=(bp // tb,),
        in_specs=[pl.BlockSpec((N_QUBITS, tb), lambda i: (0, i)),
                  full_spec(m2.shape), full_spec(zw1_2.shape), full_spec(b1c.shape),
                  full_spec(w2c.shape), full_spec(b2s.shape)],
        out_specs=pl.BlockSpec((1, tb), lambda i: (0, i)),
        compiler_params=pltpu.CompilerParams(dimension_semantics=("parallel",)),
    )(xT, m2, zw1_2, b1c, w2c, b2s)
    return out[:, :B].T                                 # (B, 1)


# ----------------------------------------------------------------------------
# Pure-NumPy reference (independent gate-by-gate product state + MLP head).
# ----------------------------------------------------------------------------
def reference_forward(x, q_weights, w1, b1, w2, b2):
    x = np.asarray(x, dtype=np.float64)
    u = build_entangling_unitary(np.asarray(q_weights, dtype=np.float64))
    mask, _ = _basis_bits()
    zsign = 1.0 - 2.0 * mask
    B = x.shape[0]
    expz = np.zeros((B, N_QUBITS))
    for n in range(B):
        psi = np.array([1.0 + 0.0j])
        for i in range(N_QUBITS):
            a = x[n, i]
            psi = np.kron(psi, np.array([np.cos(a / 2.0), -1j * np.sin(a / 2.0)]))
        psi = u @ psi
        expz[n] = (np.abs(psi) ** 2) @ zsign
    h = np.maximum(expz @ np.asarray(w1, np.float64)
                   + np.asarray(b1, np.float64).reshape(1, HID), 0.0)
    logit = (h @ np.asarray(w2, np.float64).reshape(HID, 1)
             + np.asarray(b2, np.float64).reshape(1, 1))
    return 1.0 / (1.0 + np.exp(-logit))


if __name__ == "__main__":
    key = jax.random.PRNGKey(0)
    k_qw, k_w1, k_b1, k_w2, k_b2, k_x = jax.random.split(key, 6)

    B = 8
    # Deterministic synthetic parameters (shapes from HybridClassifier.__init__)
    q_weights = jax.random.uniform(k_qw, (N_LAYERS, N_QUBITS, 3),
                                   minval=0.0, maxval=2.0 * np.pi)   # (6, 4, 3)
    w1 = jax.random.normal(k_w1, (N_QUBITS, HID)) * 0.5              # fc1: Linear(4, 8)
    b1 = jax.random.normal(k_b1, (HID,)) * 0.1
    w2 = jax.random.normal(k_w2, (HID, 1)) * 0.5                     # out: Linear(8, 1)
    b2 = jax.random.normal(k_b2, (1,)) * 0.1
    x = jax.random.uniform(k_x, (B, N_QUBITS), minval=-np.pi, maxval=np.pi)

    # Host-side folding happens ONCE here (not per call); the jitted forward is
    # a tiny pad/transpose + a single Pallas call.
    prepared = prepare_params(np.asarray(q_weights), np.asarray(w1),
                              np.asarray(b1), np.asarray(w2), np.asarray(b2))
    fwd = jax.jit(lambda xx: hybrid_forward(xx, prepared))

    out = jax.block_until_ready(fwd(x))
    ref = reference_forward(np.asarray(x), np.asarray(q_weights), np.asarray(w1),
                            np.asarray(b1), np.asarray(w2), np.asarray(b2))

    assert out.shape == (B, 1)
    assert bool(jnp.all(jnp.isfinite(out)))
    np.testing.assert_allclose(np.asarray(out), ref, rtol=2e-3, atol=2e-3)
    print("KERNEL_OK")
</pallas_src>

<mosaic_0001>
module attributes {stable_mosaic.version = 11 : i64} {
  func.func @hybrid_kernel(%arg0: i32, %arg1: memref<4x128xf32, #tpu.memory_space<vmem>>, %arg2: memref<32x16xf32, #tpu.memory_space<vmem>>, %arg3: memref<8x32xf32, #tpu.memory_space<vmem>>, %arg4: memref<8x1xf32, #tpu.memory_space<vmem>>, %arg5: memref<8x1xf32, #tpu.memory_space<vmem>>, %arg6: memref<1x1xf32, #tpu.memory_space<vmem>>, %arg7: memref<1x128xf32, #tpu.memory_space<vmem>>) attributes {dimension_semantics = [#tpu.dimension_semantics<parallel>], iteration_bounds = array<i64: 1>, scalar_prefetch = 0 : i64, scratch_operands = 0 : i64, tpu.core_type = #tpu.core_type<tc>, window_params = [{transform_indices = @transform_0, window_bounds = array<i64: 4, 128>}, {pipeline_mode = #tpu.pipeline_mode<synchronous>, transform_indices = @transform_1, window_bounds = array<i64: 32, 16>}, {pipeline_mode = #tpu.pipeline_mode<synchronous>, transform_indices = @transform_2, window_bounds = array<i64: 8, 32>}, {pipeline_mode = #tpu.pipeline_mode<synchronous>, transform_indices = @transform_3, window_bounds = array<i64: 8, 1>}, {pipeline_mode = #tpu.pipeline_mode<synchronous>, transform_indices = @transform_4, window_bounds = array<i64: 8, 1>}, {pipeline_mode = #tpu.pipeline_mode<synchronous>, transform_indices = @transform_5, window_bounds = array<i64: 1, 1>}, {transform_indices = @transform_6, window_bounds = array<i64: 1, 128>}]} {
    %c0 = arith.constant 0 : index
    %c0_0 = arith.constant 0 : index
    %0 = vector.load %arg1[%c0, %c0_0] : memref<4x128xf32, #tpu.memory_space<vmem>>, vector<4x128xf32>
    %cst = arith.constant 5.000000e-01 : f32
    %1 = vector.broadcast %cst : f32 to vector<4x128xf32>
    %2 = arith.mulf %1, %0 : vector<4x128xf32>
    %3 = math.cos %2 : vector<4x128xf32>
    %cst_1 = arith.constant 5.000000e-01 : f32
    %4 = vector.broadcast %cst_1 : f32 to vector<4x128xf32>
    %5 = arith.mulf %4, %0 : vector<4x128xf32>
    %6 = math.sin %5 : vector<4x128xf32>
    %7 = vector.extract_strided_slice %3 {offsets = [0, 0], sizes = [1, 128], strides = [1, 1]} : vector<4x128xf32> to vector<1x128xf32>
    %8 = vector.extract_strided_slice %3 {offsets = [1, 0], sizes = [1, 128], strides = [1, 1]} : vector<4x128xf32> to vector<1x128xf32>
    %9 = arith.mulf %7, %8 : vector<1x128xf32>
    %10 = vector.extract_strided_slice %3 {offsets = [0, 0], sizes = [1, 128], strides = [1, 1]} : vector<4x128xf32> to vector<1x128xf32>
    %11 = vector.extract_strided_slice %6 {offsets = [1, 0], sizes = [1, 128], strides = [1, 1]} : vector<4x128xf32> to vector<1x128xf32>
    %12 = arith.mulf %10, %11 : vector<1x128xf32>
    %13 = vector.extract_strided_slice %6 {offsets = [0, 0], sizes = [1, 128], strides = [1, 1]} : vector<4x128xf32> to vector<1x128xf32>
    %14 = vector.extract_strided_slice %3 {offsets = [1, 0], sizes = [1, 128], strides = [1, 1]} : vector<4x128xf32> to vector<1x128xf32>
    %15 = arith.mulf %13, %14 : vector<1x128xf32>
    %16 = vector.extract_strided_slice %6 {offsets = [0, 0], sizes = [1, 128], strides = [1, 1]} : vector<4x128xf32> to vector<1x128xf32>
    %17 = vector.extract_strided_slice %6 {offsets = [1, 0], sizes = [1, 128], strides = [1, 1]} : vector<4x128xf32> to vector<1x128xf32>
    %18 = arith.mulf %16, %17 : vector<1x128xf32>
    %19 = tpu.concatenate %9, %12, %15, %18 in 0 : vector<1x128xf32>, vector<1x128xf32>, vector<1x128xf32>, vector<1x128xf32> -> vector<4x128xf32>
    %20 = vector.extract_strided_slice %3 {offsets = [2, 0], sizes = [1, 128], strides = [1, 1]} : vector<4x128xf32> to vector<1x128xf32>
    %21 = vector.extract_strided_slice %3 {offsets = [3, 0], sizes = [1, 128], strides = [1, 1]} : vector<4x128xf32> to vector<1x128xf32>
    %22 = arith.mulf %20, %21 : vector<1x128xf32>
    %23 = vector.extract_strided_slice %3 {offsets = [2, 0], sizes = [1, 128], strides = [1, 1]} : vector<4x128xf32> to vector<1x128xf32>
    %24 = vector.extract_strided_slice %6 {offsets = [3, 0], sizes = [1, 128], strides = [1, 1]} : vector<4x128xf32> to vector<1x128xf32>
    %25 = arith.mulf %23, %24 : vector<1x128xf32>
    %26 = vector.extract_strided_slice %6 {offsets = [2, 0], sizes = [1, 128], strides = [1, 1]} : vector<4x128xf32> to vector<1x128xf32>
    %27 = vector.extract_strided_slice %3 {offsets = [3, 0], sizes = [1, 128], strides = [1, 1]} : vector<4x128xf32> to vector<1x128xf32>
    %28 = arith.mulf %26, %27 : vector<1x128xf32>
    %29 = vector.extract_strided_slice %6 {offsets = [2, 0], sizes = [1, 128], strides = [1, 1]} : vector<4x128xf32> to vector<1x128xf32>
    %30 = vector.extract_strided_slice %6 {offsets = [3, 0], sizes = [1, 128], strides = [1, 1]} : vector<4x128xf32> to vector<1x128xf32>
    %31 = arith.mulf %29, %30 : vector<1x128xf32>
    %32 = tpu.concatenate %22, %25, %28, %31 in 0 : vector<1x128xf32>, vector<1x128xf32>, vector<1x128xf32>, vector<1x128xf32> -> vector<4x128xf32>
    %33 = vector.extract_strided_slice %19 {offsets = [0, 0], sizes = [1, 128], strides = [1, 1]} : vector<4x128xf32> to vector<1x128xf32>
    %34 = vector.broadcast %33 : vector<1x128xf32> to vector<4x128xf32>
    %35 = arith.mulf %34, %32 : vector<4x128xf32>
    %36 = vector.extract_strided_slice %19 {offsets = [1, 0], sizes = [1, 128], strides = [1, 1]} : vector<4x128xf32> to vector<1x128xf32>
    %37 = vector.broadcast %36 : vector<1x128xf32> to vector<4x128xf32>
    %38 = arith.mulf %37, %32 : vector<4x128xf32>
    %39 = vector.extract_strided_slice %19 {offsets = [2, 0], sizes = [1, 128], strides = [1, 1]} : vector<4x128xf32> to vector<1x128xf32>
    %40 = vector.broadcast %39 : vector<1x128xf32> to vector<4x128xf32>
    %41 = arith.mulf %40, %32 : vector<4x128xf32>
    %42 = vector.extract_strided_slice %19 {offsets = [3, 0], sizes = [1, 128], strides = [1, 1]} : vector<4x128xf32> to vector<1x128xf32>
    %43 = vector.broadcast %42 : vector<1x128xf32> to vector<4x128xf32>
    %44 = arith.mulf %43, %32 : vector<4x128xf32>
    %45 = tpu.concatenate %35, %38, %41, %44 in 0 : vector<4x128xf32>, vector<4x128xf32>, vector<4x128xf32>, vector<4x128xf32> -> vector<16x128xf32>
    %c0_2 = arith.constant 0 : index
    %c0_3 = arith.constant 0 : index
    %46 = vector.load %arg2[%c0_2, %c0_3] : memref<32x16xf32, #tpu.memory_space<vmem>>, vector<32x16xf32>
    %cst_4 = arith.constant dense<0.000000e+00> : vector<32x128xf32>
    %47 = tpu.matmul %46, %45, %cst_4 {dimension_numbers = #tpu.dot_dimension_numbers<[1], [0], [0], [1], [0, 0, 1, 1], [], []>} : vector<32x16xf32>, vector<16x128xf32>, vector<32x128xf32> -> vector<32x128xf32>
    %48 = arith.mulf %47, %47 : vector<32x128xf32>
    %c0_5 = arith.constant 0 : index
    %c0_6 = arith.constant 0 : index
    %49 = vector.load %arg3[%c0_5, %c0_6] : memref<8x32xf32, #tpu.memory_space<vmem>>, vector<8x32xf32>
    %cst_7 = arith.constant dense<0.000000e+00> : vector<8x128xf32>
    %50 = tpu.matmul %49, %48, %cst_7 {dimension_numbers = #tpu.dot_dimension_numbers<[1], [0], [0], [1], [0, 0, 1, 1], [], []>} : vector<8x32xf32>, vector<32x128xf32>, vector<8x128xf32> -> vector<8x128xf32>
    %c0_8 = arith.constant 0 : index
    %c0_9 = arith.constant 0 : index
    %51 = vector.load %arg4[%c0_8, %c0_9] : memref<8x1xf32, #tpu.memory_space<vmem>>, vector<8x1xf32>
    %52 = vector.broadcast %51 : vector<8x1xf32> to vector<8x128xf32>
    %53 = arith.addf %50, %52 : vector<8x128xf32>
    %cst_10 = arith.constant 0.000000e+00 : f32
    %54 = vector.broadcast %cst_10 : f32 to vector<8x128xf32>
    %55 = arith.maximumf %53, %54 : vector<8x128xf32>
    %c0_11 = arith.constant 0 : index
    %c0_12 = arith.constant 0 : index
    %56 = vector.load %arg5[%c0_11, %c0_12] : memref<8x1xf32, #tpu.memory_space<vmem>>, vector<8x1xf32>
    %57 = vector.broadcast %56 : vector<8x1xf32> to vector<8x128xf32>
    %58 = arith.mulf %55, %57 : vector<8x128xf32>
    %cst_13 = arith.constant dense<0.000000e+00> : vector<128xf32>
    %59 = vector.multi_reduction <add>, %58, %cst_13 [0] : vector<8x128xf32> to vector<128xf32>
    %60 = vector.shape_cast %59 : vector<128xf32> to vector<1x128xf32>
    %c0_14 = arith.constant 0 : index
    %c0_15 = arith.constant 0 : index
    %61 = vector.load %arg6[%c0_14, %c0_15] : memref<1x1xf32, #tpu.memory_space<vmem>>, vector<1x1xf32>
    %62 = vector.broadcast %61 : vector<1x1xf32> to vector<1x128xf32>
    %63 = arith.addf %60, %62 : vector<1x128xf32>
    %cst_16 = arith.constant 5.000000e-01 : f32
    %64 = vector.broadcast %cst_16 : f32 to vector<1x128xf32>
    %65 = arith.mulf %64, %63 : vector<1x128xf32>
    %66 = math.tanh %65 : vector<1x128xf32>
    %cst_17 = arith.constant 1.000000e+00 : f32
    %67 = vector.broadcast %cst_17 : f32 to vector<1x128xf32>
    %68 = arith.addf %67, %66 : vector<1x128xf32>
    %cst_18 = arith.constant 5.000000e-01 : f32
    %69 = vector.broadcast %cst_18 : f32 to vector<1x128xf32>
    %70 = arith.mulf %69, %68 : vector<1x128xf32>
    %c0_19 = arith.constant 0 : index
    %c0_20 = arith.constant 0 : index
    %71 = vector.load %arg7[%c0_19, %c0_20] : memref<1x128xf32, #tpu.memory_space<vmem>>, vector<1x128xf32>
    tpu.vector_store %arg7[%c0_19, %c0_20], %70 {strides = array<i32>} : memref<1x128xf32, #tpu.memory_space<vmem>>, vector<1x128xf32>,
    return
  }
  func.func @transform_0(%arg0: i32) -> (i32, i32) {
    %c0_i32 = arith.constant 0 : i32
    %c0_i32_0 = arith.constant 0 : i32
    return %c0_i32, %arg0 : i32, i32
  }
  func.func @transform_1(%arg0: i32) -> (i32, i32) {
    %c0_i32 = arith.constant 0 : i32
    %c0_i32_0 = arith.constant 0 : i32
    %c0_i32_1 = arith.constant 0 : i32
    return %c0_i32, %c0_i32_0 : i32, i32
  }
  func.func @transform_2(%arg0: i32) -> (i32, i32) {
    %c0_i32 = arith.constant 0 : i32
    %c0_i32_0 = arith.constant 0 : i32
    %c0_i32_1 = arith.constant 0 : i32
    return %c0_i32, %c0_i32_0 : i32, i32
  }
  func.func @transform_3(%arg0: i32) -> (i32, i32) {
    %c0_i32 = arith.constant 0 : i32
    %c0_i32_0 = arith.constant 0 : i32
    %c0_i32_1 = arith.constant 0 : i32
    return %c0_i32, %c0_i32_0 : i32, i32
  }
  func.func @transform_4(%arg0: i32) -> (i32, i32) {
    %c0_i32 = arith.constant 0 : i32
    %c0_i32_0 = arith.constant 0 : i32
    %c0_i32_1 = arith.constant 0 : i32
    return %c0_i32, %c0_i32_0 : i32, i32
  }
  func.func @transform_5(%arg0: i32) -> (i32, i32) {
    %c0_i32 = arith.constant 0 : i32
    %c0_i32_0 = arith.constant 0 : i32
    %c0_i32_1 = arith.constant 0 : i32
    return %c0_i32, %c0_i32_0 : i32, i32
  }
  func.func @transform_6(%arg0: i32) -> (i32, i32) {
    %c0_i32 = arith.constant 0 : i32
    %c0_i32_0 = arith.constant 0 : i32
    return %c0_i32, %arg0 : i32, i32
  }
}

</mosaic_0001>

<llo_original>
// kernel: _lambda_.1
$region0: #{_lambda_.1}
  #allocation0 [shape = 'u32[]', space=smem, size = 0x4, offset = 0x4, fixed_abs, tag = 'smem constant byte address 0x4 - core index']
  #allocation1 [shape = 'u32[144,128]{1,0:T(1,128)}', space=vmem, size = 0x12000, scoped, tag = 'internal scratch']
  #allocation2 [shape = 'f32[1,1]{1,0:T(1,128)S(1)}', space=vmem, size = 0x200, scoped, tag = 'scoped memory for _lambda_.1']
  %s0 = inlined_call_operand.vmem [shape: f32[4,128], index: 0, kind: input, shape index: {}]
  %s1 = inlined_call_operand.hbm [shape: f32[32,16], index: 1, kind: input, shape index: {}]
  %s2 = inlined_call_operand.hbm [shape: f32[8,32], index: 2, kind: input, shape index: {}]
  %s3 = inlined_call_operand.vmem [shape: f32[8,1], index: 3, kind: input, shape index: {}]
  %s4 = inlined_call_operand.vmem [shape: f32[8,1], index: 4, kind: input, shape index: {}]
  %s5 = inlined_call_operand.<no memory space> [shape: f32[1,1], index: 5, kind: input, shape index: {}]
  %s6 = inlined_call_operand.vmem [shape: f32[1,128], index: 6, kind: output, shape index: {}]
  %s7 = sld [smem:[#allocation0]]
  $region42: #{_lambda_.1} parent=0
    _
  %s9 = ssub.s32 1, %s7
  %s10 = scalar_select 0, %s9, %s7
  %v11 = vstv %s5
  %12 = vst [vmem:[#allocation2] sm:$0x1] %v11
  $region1: #{_lambda_.1} parent=0
    #allocation3 [shape = 'u8[16384]{0}', space=vmem, size = 0x4000, scoped, tag = 'input window, operand 1, single buffered']
    #allocation4 [shape = 's32[1]{0}', space=sflag, size = 0x4, scoped, tag = 'scoped memory for _lambda_.1']
    #allocation5 [shape = 'u8[4096]{0}', space=vmem, size = 0x1000, scoped, tag = 'input window, operand 2, single buffered']
    #allocation6 [shape = 's32[1]{0}', space=sflag, size = 0x4, scoped, tag = 'scoped memory for _lambda_.1']
    %13 = vsyncpa [#allocation4], 0
    %14 = vsyncpa [#allocation6], 0
    // Predicated region
    $region2: #{_lambda_.1} parent=1 // pred_check
      _
    $region3: #{_lambda_.1} parent=1 // pred_check_branch
      %16 = sbr.rel (0) target = $region5
    $region4: #{_lambda_.1} parent=1 // pred_region
      _
    $region5: #{_lambda_.1} parent=1 // pred_fallthru
      _
    // Predicated region
    $region6: #{_lambda_.1} parent=1 // pred_check
      _
    $region7: #{_lambda_.1} parent=1 // pred_check_branch
      %18 = sbr.rel (0) target = $region9
    $region8: #{_lambda_.1} parent=1 // pred_region
      %s20 = ssub.s32 512, 512
      %21 = vsyncadd [#allocation4], %s20
      %s22 = sshll.u32 [#allocation3], 4
      %s23 = int_to_ptr.vmem [resolvable:$true] %s22
      %28 = dma.hbm_to_vmem [thread:$0]  %s1, 512, %s23, [#allocation4], 128, 128, 8
    $region9: #{_lambda_.1} parent=1 // pred_fallthru
      _
    // Predicated region
    $region10: #{_lambda_.1} parent=1 // pred_check
      _
    $region11: #{_lambda_.1} parent=1 // pred_check_branch
      %30 = sbr.rel (0) target = $region13
    $region12: #{_lambda_.1} parent=1 // pred_region
      %s32 = ssub.s32 128, 128
      %33 = vsyncadd [#allocation6], %s32
      %s35 = sshll.u32 [#allocation5], 4
      %s36 = int_to_ptr.vmem [resolvable:$true] %s35
      %38 = dma.hbm_to_vmem [thread:$0]  %s2, 128, %s36, [#allocation6]
    $region13: #{_lambda_.1} parent=1 // pred_fallthru
      _
    // Predicated region
    $region14: #{_lambda_.1} parent=1 // pred_check
      _
    $region15: #{_lambda_.1} parent=1 // pred_check_branch
      %40 = sbr.rel (0) target = $region17
    $region16: #{_lambda_.1} parent=1 // pred_region
      _
    $region17: #{_lambda_.1} parent=1 // pred_fallthru
      _
    // Predicated region
    $region18: #{_lambda_.1} parent=1 // pred_check
      _
    $region19: #{_lambda_.1} parent=1 // pred_check_branch
      %42 = sbr.rel (0) target = $region21
    $region20: #{_lambda_.1} parent=1 // pred_region
      _
    $region21: #{_lambda_.1} parent=1 // pred_fallthru
      _
    // Predicated region
    $region22: #{_lambda_.1} parent=1 // pred_check
      _
    $region23: #{_lambda_.1} parent=1 // pred_check_branch
      %44 = sbr.rel (0) target = $region25
    $region24: #{_lambda_.1} parent=1 // pred_region
      _
    $region25: #{_lambda_.1} parent=1 // pred_fallthru
      _
    // Predicated region
    $region26: #{_lambda_.1} parent=1 // pred_check
      _
    $region27: #{_lambda_.1} parent=1 // pred_check_branch
      %46 = sbr.rel (0) target = $region29
    $region28: #{_lambda_.1} parent=1 // pred_region
      %47 = dma.done [#allocation4], 512
    $region29: #{_lambda_.1} parent=1 // pred_fallthru
      _
    // Predicated region
    $region30: #{_lambda_.1} parent=1 // pred_check
      _
    $region31: #{_lambda_.1} parent=1 // pred_check_branch
      %49 = sbr.rel (0) target = $region33
    $region32: #{_lambda_.1} parent=1 // pred_region
      %50 = dma.done [#allocation6], 128
    $region33: #{_lambda_.1} parent=1 // pred_fallthru
      _
    %v51 = vld [vmem:[%s0] sm:$0xf]
    %v52 = vmul.f32 %v51, 0.5
    %v53 = vand.u32 2147483647, %v52
    %vm54 = vcmp.le.f32.partialorder %v53, 0.7853982
    %vm55 = vcmp.lt.s32.totalorder %v52, 0
    %v56 = vand.u32 %v52, 2139095040
    %v57 = vshrl.u32 %v56, 23
    %v58 = vsub.s32 %v57, 127
    %v59 = vand.u32 2147483647, %v52
    %v60 = vand.u32 %v59, 8388607
    %v61 = vor.u32 %v60, 8388608
    %v62 = vsub.s32 0, %v61
    %v63 = vadd.s32 %v58, 1
    %vm64 = vcmp.gt.s32.totalorder %v63, 0
    %v65 = vsel %vm64, %v63, 0
    %v66 = vshrl.u32 %v65, 5
    %v67 = vand.u32 %v65, 31
    %v68 = vsub.s32 32, %v67
    %v69 = vshrl.u32 683565275, %v68
    %v70 = vshll.u32 683565275, %v67
    %v71 = vshrl.u32 2475754826, %v68
    %v72 = vor.u32 %v70, %v71
    %v73 = vshll.u32 2475754826, %v67
    %v74 = vshrl.u32 2131351028, %v68
    %v75 = vor.u32 %v73, %v74
    %v76 = vshll.u32 2131351028, %v67
    %v77 = vshrl.u32 2102212464, %v68
    %v78 = vor.u32 %v76, %v77
    %v79 = vshll.u32 2102212464, %v67
    %v80 = vshrl.u32 920167782, %v68
    %v81 = vor.u32 %v79, %v80
    %v82 = vshll.u32 920167782, %v67
    %v83 = vshrl.u32 1326507024, %v68
    %v84 = vor.u32 %v82, %v83
    %vm85 = vcmp.lt.s32.totalorder %v66, 1
    %vm86 = vcmp.lt.s32.totalorder %v66, 2
    %vm87 = vcmp.lt.s32.totalorder %v66, 3
    %vm88 = vcmp.lt.s32.totalorder %v66, 4
    %v89 = vsel %vm85, %v69, %v72
    %v90 = vsel %vm88, %v78, 2102212464
    %v91 = vsel %vm87, %v75, %v90
    %v92 = vsel %vm86, %v89, %v91
    %v93 = vsel %vm85, %v72, %v75
    %v94 = vsel %vm88, %v81, 920167782
    %v95 = vsel %vm87, %v78, %v94
    %v96 = vsel %vm86, %v93, %v95
    %v97 = vsel %vm85, %v75, %v78
    %v98 = vsel %vm88, %v84, 1326507024
    %v99 = vsel %vm87, %v81, %v98
    %v100 = vsel %vm86, %v97, %v99
    %v101 = vshll.u32 %v61, 8
    %v102 = vmul.u32.u64.compose %v101, %v100
    %v103 = vextract.low.u32 %v102
    %v104 = vextract.high.u32 %v102
    %v105 = vmul.u32.u64.compose %v101, %v96
    %v106 = vextract.low.u32 %v105
    %v107 = vextract.high.u32 %v105
    %v108 = vmul.u32 %v101, %v92
    %v109 = vadd.s32 %v104, %v106
    %vm110 = vc.u32 %v104, %v106
    %v111 = vadd.s32 %v107, 1
    %v112 = vsel %vm110, %v111, %v107
    %v113 = vadd.s32 %v108, %v112
    %v114 = vadd.s32 %v113, 536870912
    %v115 = vshrl.u32 %v114, 30
    %v116 = vshll.u32 %v115, 30
    %v117 = vsub.s32 %v113, %v116
    %vm118 = vcmp.lt.s32.totalorder %v117, 0
    %v119 = vsub.s32 0, %v117
    %v120 = vsel %vm118, %v119, %v117
    %v121 = vclz %v120
    %v122 = vsub.s32 %v121, 2
    %vm123 = vcmp.gt.s32.totalorder 0, %v122
    %v124 = vsel %vm123, 0, %v122
    %v125 = vsub.s32 32, %v124
    %v126 = vshll.u32 %v117, %v124
    %v127 = vshrl.u32 %v109, %v125
    %v128 = vor.u32 %v126, %v127
    %v129 = vsub.s32 4294967266, %v124
    %v130 = vadd.s32 %v129, 127
    %v131 = vshll.u32 %v130, 23
    %v132 = vor.u32 4788187, %v131
    %v133 = vand.u32 2147483647, %v132
    %v135 = vcvt.s32.f32 %v128
    %v136 = vmul.f32 %v135, %v133
    %v137 = vxor.u32 %v136, 2147483648
    %v138 = vsel %vm55, %v137, %v136
    %v139 = vsub.s32 4, %v115
    %v140 = vsel %vm55, %v139, %v115
    %v141 = vsel %vm54, %v52, %v138
    %v142 = vsel %vm54, 0, %v140
    %v143 = vcosq.f32.pop %v141
    %v144 = vsinq.f32.pop %v141
    %vm145 = vweird.f32 %v52
    %v146 = vand.u32 %v142, 3
    %vm147 = vcmp.lt.s32.totalorder %v146, 2
    %vm148 = vcmp.eq.s32.totalorder %v146, 0
    %v149 = vxor.u32 %v144, 2147483648
    %v150 = vsel %vm148, %v143, %v149
    %vm151 = vcmp.eq.s32.totalorder %v146, 2
    %v152 = vxor.u32 %v143, 2147483648
    %v153 = vsel %vm151, %v152, %v144
    %v154 = vsel %vm147, %v150, %v153
    %v155 = vsel %vm145, nan, %v154
    %v156 = vand.u32 2147483647, %v52
    %vm157 = vcmp.le.f32.partialorder %v156, 0.7853982
    %vm158 = vcmp.lt.s32.totalorder %v52, 0
    %v159 = vand.u32 %v52, 2139095040
    %v160 = vshrl.u32 %v159, 23
    %v161 = vsub.s32 %v160, 127
    %v162 = vand.u32 2147483647, %v52
    %v163 = vand.u32 %v162, 8388607
    %v164 = vor.u32 %v163, 8388608
    %v165 = vsub.s32 0, %v164
    %v166 = vadd.s32 %v161, 1
    %vm167 = vcmp.gt.s32.totalorder %v166, 0
    %v168 = vsel %vm167, %v166, 0
    %v169 = vshrl.u32 %v168, 5
    %v170 = vand.u32 %v168, 31
    %v171 = vsub.s32 32, %v170
    %v172 = vshrl.u32 683565275, %v171
    %v173 = vshll.u32 683565275, %v170
    %v174 = vshrl.u32 2475754826, %v171
    %v175 = vor.u32 %v173, %v174
    %v176 = vshll.u32 2475754826, %v170
    %v177 = vshrl.u32 2131351028, %v171
    %v178 = vor.u32 %v176, %v177
    %v179 = vshll.u32 2131351028, %v170
    %v180 = vshrl.u32 2102212464, %v171
    %v181 = vor.u32 %v179, %v180
    %v182 = vshll.u32 2102212464, %v170
    %v183 = vshrl.u32 920167782, %v171
    %v184 = vor.u32 %v182, %v183
    %v185 = vshll.u32 920167782, %v170
    %v186 = vshrl.u32 1326507024, %v171
    %v187 = vor.u32 %v185, %v186
    %vm188 = vcmp.lt.s32.totalorder %v169, 1
    %vm189 = vcmp.lt.s32.totalorder %v169, 2
    %vm190 = vcmp.lt.s32.totalorder %v169, 3
    %vm191 = vcmp.lt.s32.totalorder %v169, 4
    %v192 = vsel %vm188, %v172, %v175
    %v193 = vsel %vm191, %v181, 2102212464
    %v194 = vsel %vm190, %v178, %v193
    %v195 = vsel %vm189, %v192, %v194
    %v196 = vsel %vm188, %v175, %v178
    %v197 = vsel %vm191, %v184, 920167782
    %v198 = vsel %vm190, %v181, %v197
    %v199 = vsel %vm189, %v196, %v198
    %v200 = vsel %vm188, %v178, %v181
    %v201 = vsel %vm191, %v187, 1326507024
    %v202 = vsel %vm190, %v184, %v201
    %v203 = vsel %vm189, %v200, %v202
    %v204 = vshll.u32 %v164, 8
    %v205 = vmul.u32.u64.compose %v204, %v203
    %v206 = vextract.low.u32 %v205
    %v207 = vextract.high.u32 %v205
    %v208 = vmul.u32.u64.compose %v204, %v199
    %v209 = vextract.low.u32 %v208
    %v210 = vextract.high.u32 %v208
    %v211 = vmul.u32 %v204, %v195
    %v212 = vadd.s32 %v207, %v209
    %vm213 = vc.u32 %v207, %v209
    %v214 = vadd.s32 %v210, 1
    %v215 = vsel %vm213, %v214, %v210
    %v216 = vadd.s32 %v211, %v215
    %v217 = vadd.s32 %v216, 536870912
    %v218 = vshrl.u32 %v217, 30
    %v219 = vshll.u32 %v218, 30
    %v220 = vsub.s32 %v216, %v219
    %vm221 = vcmp.lt.s32.totalorder %v220, 0
    %v222 = vsub.s32 0, %v220
    %v223 = vsel %vm221, %v222, %v220
    %v224 = vclz %v223
    %v225 = vsub.s32 %v224, 2
    %vm226 = vcmp.gt.s32.totalorder 0, %v225
    %v227 = vsel %vm226, 0, %v225
    %v228 = vsub.s32 32, %v227
    %v229 = vshll.u32 %v220, %v227
    %v230 = vshrl.u32 %v212, %v228
    %v231 = vor.u32 %v229, %v230
    %v232 = vsub.s32 4294967266, %v227
    %v233 = vadd.s32 %v232, 127
    %v234 = vshll.u32 %v233, 23
    %v235 = vor.u32 4788187, %v234
    %v236 = vand.u32 2147483647, %v235
    %v238 = vcvt.s32.f32 %v231
    %v239 = vmul.f32 %v238, %v236
    %v240 = vxor.u32 %v239, 2147483648
    %v241 = vsel %vm158, %v240, %v239
    %v242 = vsub.s32 4, %v218
    %v243 = vsel %vm158, %v242, %v218
    %v244 = vsel %vm157, %v52, %v241
    %v245 = vsel %vm157, 0, %v243
    %v246 = vcosq.f32.pop %v244
    %v247 = vsinq.f32.pop %v244
    %vm248 = vweird.f32 %v52
    %v249 = vadd.s32 %v245, 3
    %v250 = vand.u32 %v249, 3
    %vm251 = vcmp.lt.s32.totalorder %v250, 2
    %vm252 = vcmp.eq.s32.totalorder %v250, 0
    %v253 = vxor.u32 %v247, 2147483648
    %v254 = vsel %vm252, %v246, %v253
    %vm255 = vcmp.eq.s32.totalorder %v250, 2
    %v256 = vxor.u32 %v246, 2147483648
    %v257 = vsel %vm255, %v256, %v247
    %v258 = vsel %vm251, %v254, %v257
    %v259 = vsel %vm248, nan, %v258
    %v261 = vrot.slane %v155, 1
    %v263 = vmul.f32 %v155, %v261
    %v265 = vrot.slane %v259, 1
    %v267 = vmul.f32 %v155, %v265
    %v268 = vmul.f32 %v259, %v261
    %v269 = vmul.f32 %v259, %v265
    %v271 = vrot.slane %v267, 7
    %v274 = vrot.slane %v268, 6
    %v277 = vrot.slane %v269, 5
    %vm279 = vcmask 1040384
    %v280 = vsel %vm279, %v263, %v271
    %vm281 = vcmask 1041408
    %v282 = vsel %vm281, %v280, %v274
    %vm283 = vcmask 1042432
    %v284 = vsel %vm283, %v282, %v277
    %v286 = vrot.slane %v263, 2
    %v288 = vrot.slane %v267, 1
    %v290 = vrot.slane %v269, 7
    %v292 = vsel %vm279, %v286, %v288
    %v293 = vsel %vm281, %v292, %v268
    %v294 = vsel %vm283, %v293, %v290
    %v295 = vlaneseq
    %v296 = vshrl.u32 %v295, 7
    %v297 = vsub.s32 0, %v296
    %v298 = vrot.slane %v284, %v297
    %v299 = vmul.f32 %v298, %v294
    %v300 = vlaneseq
    %v301 = vshrl.u32 %v300, 7
    %v302 = vsub.s32 1, %v301
    %v303 = vrot.slane %v284, %v302
    %v304 = vmul.f32 %v303, %v294
    %v305 = vlaneseq
    %v306 = vshrl.u32 %v305, 7
    %v307 = vsub.s32 2, %v306
    %v308 = vrot.slane %v284, %v307
    %v309 = vmul.f32 %v308, %v294
    %v310 = vlaneseq
    %v311 = vshrl.u32 %v310, 7
    %v312 = vsub.s32 3, %v311
    %v313 = vrot.slane %v284, %v312
    %v314 = vmul.f32 %v313, %v294
    %v316 = vrot.slane %v304, 4
    %v319 = vrot.slane %v314, 4
    %vm321 = vcmask 1043456
    %v322 = vsel %vm321, %v299, %v316
    %v323 = vsel %vm321, %v309, %v319
    %v324 = vld [vmem:[#allocation3] sm:$0xff]
    %v325 = vld [vmem:[#allocation3 + $0x8] sm:$0xff]
    %v326 = vld [vmem:[#allocation3 + $0x10] sm:$0xff]
    %v327 = vld [vmem:[#allocation3 + $0x18] sm:$0xff]
    %vm328 = vcmask 130048
    %v330 = vsel %vm328, %v324, 0
    %v333 = vsel %vm328, %v325, 0
    %v336 = vsel %vm328, %v326, 0
    %v339 = vsel %vm328, %v327, 0
    %341 = vmatprep.subr.mxu0 0.0
    %342 = vmatpush1.msra.mxu0 %v322
    %343 = vmatprep.subr.mxu0 0.0
    %344 = vmatpush1.msra.mxu0 %v323
    %345 = vmatprep.subr.mxu0 0.0
    %346 = vmatpush1.msra.mxu0 0.0
    %347 = vmatprep.subr.mxu0 0.0
    %348 = vmatpush1.msra.mxu0 0.0
    %349 = vmatprep.subr.mxu0 0.0
    %350 = vmatpush1.msra.mxu0 0.0
    %351 = vmatprep.subr.mxu0 0.0
    %352 = vmatpush1.msra.mxu0 0.0
    %353 = vmatprep.subr.mxu0 0.0
    %354 = vmatpush1.msra.mxu0 0.0
    %355 = vmatprep.subr.mxu0 0.0
    %356 = vmatpush1.msra.mxu0 0.0
    %357 = vmatprep.subr.mxu0 0.0
    %358 = vmatpush1.msra.mxu0 0.0
    %359 = vmatprep.subr.mxu0 0.0
    %360 = vmatpush1.msra.mxu0 0.0
    %361 = vmatprep.subr.mxu0 0.0
    %362 = vmatpush1.msra.mxu0 0.0
    %363 = vmatprep.subr.mxu0 0.0
    %364 = vmatpush1.msra.mxu0 0.0
    %365 = vmatprep.subr.mxu0 0.0
    %366 = vmatpush1.msra.mxu0 0.0
    %367 = vmatprep.subr.mxu0 0.0
    %368 = vmatpush1.msra.mxu0 0.0
    %369 = vmatprep.subr.mxu0 0.0
    %370 = vmatpush1.msra.mxu0 0.0
    %371 = vmatprep.subr.mxu0 0.0
    %372 = vmatpush1.msra.mxu0 0.0
    %373 = vmatprep.subr.mxu0 0.0
    %374 = vmatpush1.msra.mxu0 0.0
    %375 = vmatprep.subr.mxu0 0.0
    %376 = vmatpush1.msra.mxu0 0.0
    %377 = vmatprep.subr.mxu0 0.0
    %378 = vmatpush1.msra.mxu0 0.0
    %379 = vmatprep.subr.mxu0 0.0
    %380 = vmatpush1.msra.mxu0 0.0
    %381 = vmatprep.subr.mxu0 0.0
    %382 = vmatpush1.msra.mxu0 0.0
    %383 = vmatprep.subr.mxu0 0.0
    %384 = vmatpush1.msra.mxu0 0.0
    %385 = vmatprep.subr.mxu0 0.0
    %386 = vmatpush1.msra.mxu0 0.0
    %387 = vmatprep.subr.mxu0 0.0
    %388 = vmatpush1.msra.mxu0 0.0
    %389 = vmatprep.subr.mxu0 0.0
    %390 = vmatpush1.msra.mxu0 0.0
    %391 = vmatprep.subr.mxu0 0.0
    %392 = vmatpush1.msra.mxu0 0.0
    %393 = vmatprep.subr.mxu0 0.0
    %394 = vmatpush1.msra.mxu0 0.0
    %395 = vmatprep.subr.mxu0 0.0
    %396 = vmatpush1.msra.mxu0 0.0
    %397 = vmatprep.subr.mxu0 0.0
    %398 = vmatpush1.msra.mxu0 0.0
    %399 = vmatprep.subr.mxu0 0.0
    %400 = vmatpush1.msra.mxu0 0.0
    %401 = vmatprep.subr.mxu0 0.0
    %402 = vmatpush1.msra.mxu0 0.0
    %403 = vmatprep.subr.mxu0 0.0
    %404 = vmatpush1.msra.mxu0 0.0
    %405 = vmatprep.mubr.f32.mxu0 0.0
    %406 = vmatmul.mubr.f32.gmra.mrb[0].mxu0 %v330
    %v407 = vpop.f32.mrb[0].mxu0
    %v408 = vadd.f32 0.0, %v407
    %v409 = vpop.f32.mrb[0].mxu0
    %410 = vmatprep.mubr.f32.mxu0 0.0
    %411 = vmatmul.mubr.f32.gmra.mrb[0].mxu0 %v333
    %v412 = vpop.f32.mrb[0].mxu0
    %v413 = vadd.f32 0.0, %v412
    %v414 = vpop.f32.mrb[0].mxu0
    %415 = vmatprep.mubr.f32.mxu0 0.0
    %416 = vmatmul.mubr.f32.gmra.mrb[0].mxu0 %v336
    %v417 = vpop.f32.mrb[0].mxu0
    %v418 = vadd.f32 0.0, %v417
    %v419 = vpop.f32.mrb[0].mxu0
    %420 = vmatprep.mubr.f32.mxu0 0.0
    %421 = vmatmul.mubr.f32.gmra.mrb[0].mxu0 %v339
    %v422 = vpop.f32.mrb[0].mxu0
    %v423 = vadd.f32 0.0, %v422
    %v424 = vpop.f32.mrb[0].mxu0
    %425 = vdwg.mxu0
    %v426 = vmul.f32 %v408, %v408
    %v427 = vmul.f32 %v413, %v413
    %v428 = vmul.f32 %v418, %v418
    %v429 = vmul.f32 %v423, %v423
    %v430 = vld [vmem:[#allocation5] sm:$0xff]
    %v431 = vld [vmem:[%s3] sm:$0xff]
    %433 = vset.pattern.permute.xlu0 0
    %434 = vperm.xlu0 %433, %v431
    %v435 = vpop.permute.xlu0 %434
    %vm437 = vcmask 261120
    %v439 = vsel %vm437, %v430, 0
    %441 = vmatprep.subr.mxu0 0.0
    %442 = vmatpush1.msra.mxu0 %v426
    %443 = vmatprep.subr.mxu0 0.0
    %444 = vmatpush1.msra.mxu0 %v427
    %445 = vmatprep.subr.mxu0 0.0
    %446 = vmatpush1.msra.mxu0 %v428
    %447 = vmatprep.subr.mxu0 0.0
    %448 = vmatpush1.msra.mxu0 %v429
    %449 = vmatprep.subr.mxu0 0.0
    %450 = vmatpush1.msra.mxu0 0.0
    %451 = vmatprep.subr.mxu0 0.0
    %452 = vmatpush1.msra.mxu0 0.0
    %453 = vmatprep.subr.mxu0 0.0
    %454 = vmatpush1.msra.mxu0 0.0
    %455 = vmatprep.subr.mxu0 0.0
    %456 = vmatpush1.msra.mxu0 0.0
    %457 = vmatprep.subr.mxu0 0.0
    %458 = vmatpush1.msra.mxu0 0.0
    %459 = vmatprep.subr.mxu0 0.0
    %460 = vmatpush1.msra.mxu0 0.0
    %461 = vmatprep.subr.mxu0 0.0
    %462 = vmatpush1.msra.mxu0 0.0
    %463 = vmatprep.subr.mxu0 0.0
    %464 = vmatpush1.msra.mxu0 0.0
    %465 = vmatprep.subr.mxu0 0.0
    %466 = vmatpush1.msra.mxu0 0.0
    %467 = vmatprep.subr.mxu0 0.0
    %468 = vmatpush1.msra.mxu0 0.0
    %469 = vmatprep.subr.mxu0 0.0
    %470 = vmatpush1.msra.mxu0 0.0
    %471 = vmatprep.subr.mxu0 0.0
    %472 = vmatpush1.msra.mxu0 0.0
    %473 = vmatprep.subr.mxu0 0.0
    %474 = vmatpush1.msra.mxu0 0.0
    %475 = vmatprep.subr.mxu0 0.0
    %476 = vmatpush1.msra.mxu0 0.0
    %477 = vmatprep.subr.mxu0 0.0
    %478 = vmatpush1.msra.mxu0 0.0
    %479 = vmatprep.subr.mxu0 0.0
    %480 = vmatpush1.msra.mxu0 0.0
    %481 = vmatprep.subr.mxu0 0.0
    %482 = vmatpush1.msra.mxu0 0.0
    %483 = vmatprep.subr.mxu0 0.0
    %484 = vmatpush1.msra.mxu0 0.0
    %485 = vmatprep.subr.mxu0 0.0
    %486 = vmatpush1.msra.mxu0 0.0
    %487 = vmatprep.subr.mxu0 0.0
    %488 = vmatpush1.msra.mxu0 0.0
    %489 = vmatprep.subr.mxu0 0.0
    %490 = vmatpush1.msra.mxu0 0.0
    %491 = vmatprep.subr.mxu0 0.0
    %492 = vmatpush1.msra.mxu0 0.0
    %493 = vmatprep.subr.mxu0 0.0
    %494 = vmatpush1.msra.mxu0 0.0
    %495 = vmatprep.subr.mxu0 0.0
    %496 = vmatpush1.msra.mxu0 0.0
    %497 = vmatprep.subr.mxu0 0.0
    %498 = vmatpush1.msra.mxu0 0.0
    %499 = vmatprep.subr.mxu0 0.0
    %500 = vmatpush1.msra.mxu0 0.0
    %501 = vmatprep.subr.mxu0 0.0
    %502 = vmatpush1.msra.mxu0 0.0
    %503 = vmatprep.subr.mxu0 0.0
    %504 = vmatpush1.msra.mxu0 0.0
    %505 = vmatprep.mubr.f32.mxu0 0.0
    %506 = vmatmul.mubr.f32.gmra.mrb[0].mxu0 %v439
    %v507 = vpop.f32.mrb[0].mxu0
    %v508 = vadd.f32 %v435, %v507
    %v509 = vpop.f32.mrb[0].mxu0
    %510 = vdwg.mxu0
    %v511 = vmax.f32 %v508, 0.0
    %v512 = vld [vmem:[%s4] sm:$0xff]
    %514 = vset.pattern.permute.xlu0 0
    %515 = vperm.xlu0 %514, %v512
    %v516 = vpop.permute.xlu0 %515
    %v518 = vmul.f32 %v511, %v516
    %v519 = vrot.slane %v518, 4
    %v520 = vadd.f32 %v518, %v519
    %v521 = vrot.slane %v520, 2
    %v522 = vadd.f32 %v520, %v521
    %v523 = vrot.slane %v522, 1
    %v524 = vadd.f32 %v522, %v523
    %v525 = vld [vmem:[#allocation2] sm:$0x1]
    %527 = vset.pattern.permute.xlu0 0
    %528 = vperm.xlu0 %527, %v525
    %v529 = vpop.permute.xlu0 %528
    %v531 = vlaneseq
    %v532 = vshrl.u32 %v531, 7
    %v533 = vsub.s32 0, %v532
    %v534 = vrot.slane %v529, %v533
    %v535 = vadd.f32 %v524, %v534
    %v536 = vmul.f32 %v535, 0.5
    %v537 = vtanh.pop %v536
    %v538 = vadd.f32 %v537, 1.0
    %v539 = vmul.f32 %v538, 0.5
    %540 = vst [vmem:[%s6] sm:$0x1] %v539
    // Predicated region
    $region34: #{_lambda_.1} parent=1 // pred_check
      _
    $region35: #{_lambda_.1} parent=1 // pred_check_branch
      %542 = sbr.rel (0) target = $region37
    $region36: #{_lambda_.1} parent=1 // pred_region
      _
    $region37: #{_lambda_.1} parent=1 // pred_fallthru
      _
    // Predicated region
    $region38: #{_lambda_.1} parent=1 // pred_check
      _
    $region39: #{_lambda_.1} parent=1 // pred_check_branch
      %544 = sbr.rel (0) target = $region41
    $region40: #{_lambda_.1} parent=1 // pred_region
      _
    $region41: #{_lambda_.1} parent=1 // pred_fallthru
      _
    %545 = vsyncpa [#allocation4], 1
    %546 = vsyncpa [#allocation6], 1

</llo_original>
